<compile_context>
chip_gen: v7x
topology: tpu7x:2x2x1
jax: 0.10.0
libtpu: 0.0.40
codegen_flags: <defaults>
</compile_context>

<pallas_src>
import functools

import jax
import jax.numpy as jnp
from jax.experimental import pallas as pl
from jax.experimental.pallas import tpu as pltpu


def _frame_similarity_kernel(batch, time_window, lookup_window,
                             x_ref, pw_ref, fw_ref, fb_ref, o_ref):
    # x_ref:  (B*T, C)    pooled frame features, all batch elements
    # pw_ref: (C, Sp)     projection weight, transposed + lane-padded
    # fw_ref: (L, Dp)     fc weight, transposed + lane-padded
    # fb_ref: (1, Dp)     fc bias, lane-padded
    # o_ref:  (B, T, Dp)  lane-dense output slab
    B = batch
    T = time_window
    L = lookup_window
    pad = (L - 1) // 2
    Sp = pw_ref.shape[1]
    Dp = fw_ref.shape[1]

    # Projection (Linear, bias=False) batched over all B*T rows on the MXU.
    proj = jnp.dot(x_ref[...], pw_ref[...], preferred_element_type=jnp.float32)

    # F.normalize(p=2, dim=-1): x / max(||x||, 1e-12)
    #   == x * rsqrt(max(sum(x^2), 1e-24))  (sqrt is monotone; rsqrt -> EUP).
    sumsq = jnp.sum(proj * proj, axis=-1, keepdims=True)
    proj = proj * jax.lax.rsqrt(jnp.maximum(sumsq, 1e-24))

    # [B*T, Sp] -> [B, T, Sp]; per-batch cosine similarity batched on the MXU.
    proj = proj.reshape(B, T, Sp)
    sim = jnp.einsum('btd,bsd->bts', proj, proj,
                     preferred_element_type=jnp.float32)       # [B, T, T]

    # Hoisted diagonal-offset map reused by every band shift.
    t_i = jax.lax.broadcasted_iota(jnp.int32, (T, T), 0)
    j_i = jax.lax.broadcasted_iota(jnp.int32, (T, T), 1)
    off = j_i - t_i                                            # [T, T]

    fw = fw_ref[...]                                           # [L, Dp]
    acc = jnp.broadcast_to(fb_ref[...][None], (B, T, Dp))      # bias (hoisted)

    # Banded similarity lookup fused with the fc matmul:
    #   out[b, t, :] = bias + sum_l sim[b, t, t + l - pad] * fw[l, :]
    # where out-of-range band entries contribute zero (== the zero pad +
    # advanced-indexing gather in the PyTorch forward).
    for l in range(L):                                         # static unroll
        diag_l = jnp.sum(jnp.where(off == (l - pad), sim, 0.0),
                         axis=-1, keepdims=True)               # [B, T, 1]
        acc = acc + diag_l * fw[l:l + 1, :][None]              # VPU FMA

    # Single lane-dense, unmasked store of the whole output slab.
    o_ref[...] = jnp.maximum(acc, 0.0).astype(o_ref.dtype)


def frame_similarity(inputs, proj_w, fc_w, fc_b, lookup_window):
    """inputs: list of [B, C_i, T, H_i, W_i] arrays (PyTorch NCTHW layout).
    proj_w: [S, in_filters] (torch Linear weight), fc_w: [D, L], fc_b: [D]."""
    # --- glue: spatial mean pool, channel concat, [B,C,T] -> [B,T,C] ---
    pooled = jnp.concatenate([jnp.mean(x, axis=(3, 4)) for x in inputs], axis=1)
    x = jnp.transpose(pooled, (0, 2, 1)).astype(jnp.float32)     # [B, T, C]
    B, T, C = x.shape
    S = proj_w.shape[0]
    D, L = fc_w.shape
    assert L == lookup_window and lookup_window % 2 == 1

    # Lane-pad the similarity dim and output dim to 128 (zero columns are
    # inert: they add 0 to the norm, the similarity, and the fc output).
    LANE = 128
    Sp = ((S + LANE - 1) // LANE) * LANE
    Dp = ((D + LANE - 1) // LANE) * LANE

    pw = jnp.zeros((C, Sp), jnp.float32).at[:, :S].set(proj_w.T.astype(jnp.float32))
    fw = jnp.zeros((L, Dp), jnp.float32).at[:, :D].set(fc_w.T.astype(jnp.float32))
    fb = jnp.zeros((1, Dp), jnp.float32).at[:, :D].set(
        fc_b.astype(jnp.float32)[None, :])

    x2d = x.reshape(B * T, C)

    kernel = functools.partial(_frame_similarity_kernel, B, T, lookup_window)
    out3 = pl.pallas_call(
        kernel,
        out_shape=jax.ShapeDtypeStruct((B, T, Dp), jnp.float32),
        in_specs=[
            pl.BlockSpec(memory_space=pltpu.MemorySpace.VMEM),   # x2d
            pl.BlockSpec(memory_space=pltpu.MemorySpace.VMEM),   # pw
            pl.BlockSpec(memory_space=pltpu.MemorySpace.VMEM),   # fw
            pl.BlockSpec(memory_space=pltpu.MemorySpace.VMEM),   # fb
        ],
        out_specs=pl.BlockSpec(memory_space=pltpu.MemorySpace.VMEM),
    )(x2d, pw, fw, fb)

    # Slice off the lane padding outside the kernel.
    return out3[:, :, :D]


def frame_similarity_ref(inputs, proj_w, fc_w, fc_b, lookup_window):
    """Pure-JAX reference mirroring the PyTorch forward exactly."""
    pooled = jnp.concatenate([jnp.mean(x, axis=(3, 4)) for x in inputs], axis=1)
    x = jnp.transpose(pooled, (0, 2, 1))
    x = x @ proj_w.T
    x = x / jnp.maximum(jnp.linalg.norm(x, axis=2, keepdims=True), 1e-12)
    B, T, _ = x.shape
    sim = jnp.einsum('btd,bsd->bts', x, x)
    pad = (lookup_window - 1) // 2
    simp = jnp.pad(sim, ((0, 0), (0, 0), (pad, pad)))
    t_idx = jnp.arange(T)[:, None]
    l_idx = jnp.arange(lookup_window)[None, :]
    band = simp[:, t_idx, l_idx + t_idx]                         # [B, T, L]
    return jax.nn.relu(band @ fc_w.T + fc_b)


if __name__ == "__main__":
    key = jax.random.PRNGKey(0)
    k1, k2, k3, k4, k5 = jax.random.split(key, 5)

    # Small shapes consistent with the module's forward.
    B, T, H, W = 2, 8, 4, 4
    c_list = [8, 8]                      # two feature maps, concat -> in_filters
    in_filters = sum(c_list)             # 16
    similarity_dim = 32
    lookup_window = 9                    # must be odd
    output_dim = 16

    inputs = [
        jax.random.normal(k1, (B, c_list[0], T, H, W), jnp.float32),
        jax.random.normal(k2, (B, c_list[1], T, H, W), jnp.float32),
    ]
    # Deterministic synthetic parameters (shapes per nn.Linear in __init__).
    proj_w = jax.random.normal(k3, (similarity_dim, in_filters), jnp.float32) * 0.1
    fc_w = jax.random.normal(k4, (output_dim, lookup_window), jnp.float32) * 0.1
    fc_b = jax.random.normal(k5, (output_dim,), jnp.float32) * 0.1

    out = frame_similarity(inputs, proj_w, fc_w, fc_b, lookup_window)
    out = jax.block_until_ready(out)

    ref = frame_similarity_ref(inputs, proj_w, fc_w, fc_b, lookup_window)
    assert out.shape == (B, T, output_dim), out.shape
    max_err = float(jnp.max(jnp.abs(out - ref)))
    assert jnp.allclose(out, ref, atol=2e-4, rtol=2e-4), max_err
    print("KERNEL_OK")
</pallas_src>

<mosaic_0001>
module attributes {stable_mosaic.version = 11 : i64} {
  func.func @_frame_similarity_kernel(%arg0: memref<16x16xf32, #tpu.memory_space<vmem>>, %arg1: memref<16x128xf32, #tpu.memory_space<vmem>>, %arg2: memref<9x128xf32, #tpu.memory_space<vmem>>, %arg3: memref<1x128xf32, #tpu.memory_space<vmem>>, %arg4: memref<2x8x128xf32, #tpu.memory_space<vmem>>) attributes {dimension_semantics = [], scalar_prefetch = 0 : i64, scratch_operands = 0 : i64, tpu.core_type = #tpu.core_type<tc>} {
    %c0 = arith.constant 0 : index
    %c0_0 = arith.constant 0 : index
    %0 = vector.load %arg0[%c0, %c0_0] : memref<16x16xf32, #tpu.memory_space<vmem>>, vector<16x16xf32>
    %c0_1 = arith.constant 0 : index
    %c0_2 = arith.constant 0 : index
    %1 = vector.load %arg1[%c0_1, %c0_2] : memref<16x128xf32, #tpu.memory_space<vmem>>, vector<16x128xf32>
    %cst = arith.constant dense<0.000000e+00> : vector<16x128xf32>
    %2 = tpu.matmul %0, %1, %cst {dimension_numbers = #tpu.dot_dimension_numbers<[1], [0], [0], [1], [0, 0, 1, 1], [], []>} : vector<16x16xf32>, vector<16x128xf32>, vector<16x128xf32> -> vector<16x128xf32>
    %3 = arith.mulf %2, %2 : vector<16x128xf32>
    %cst_3 = arith.constant dense<0.000000e+00> : vector<16xf32>
    %4 = vector.multi_reduction <add>, %3, %cst_3 [1] : vector<16x128xf32> to vector<16xf32>
    %5 = vector.shape_cast %4 : vector<16xf32> to vector<16x1xf32>
    %cst_4 = arith.constant 1.000000e-24 : f32
    %6 = vector.broadcast %cst_4 : f32 to vector<16x1xf32>
    %7 = arith.maximumf %5, %6 : vector<16x1xf32>
    %8 = math.rsqrt %7 : vector<16x1xf32>
    %9 = vector.broadcast %8 : vector<16x1xf32> to vector<16x128xf32>
    %10 = arith.mulf %2, %9 : vector<16x128xf32>
    %11 = vector.shape_cast %10 : vector<16x128xf32> to vector<2x8x128xf32>
    "tpu.trace_start"() <{level = 10 : i32, message = "btd,bsd->bts"}> : () -> ()
    %cst_5 = arith.constant dense<0.000000e+00> : vector<2x8x8xf32>
    %12 = tpu.matmul %11, %11, %cst_5 {dimension_numbers = #tpu.dot_dimension_numbers<[2], [2], [1], [1], [0, 0, 0, 1, 1, 1], [0], [0]>} : vector<2x8x128xf32>, vector<2x8x128xf32>, vector<2x8x8xf32> -> vector<2x8x8xf32>
    "tpu.trace_stop"() : () -> ()
    %13 = tpu.iota {dimensions = array<i32: 0>} : vector<8x8xi32>
    %14 = tpu.iota {dimensions = array<i32: 1>} : vector<8x8xi32>
    %15 = arith.subi %14, %13 : vector<8x8xi32>
    %c0_6 = arith.constant 0 : index
    %c0_7 = arith.constant 0 : index
    %16 = vector.load %arg2[%c0_6, %c0_7] : memref<9x128xf32, #tpu.memory_space<vmem>>, vector<9x128xf32>
    %c0_8 = arith.constant 0 : index
    %c0_9 = arith.constant 0 : index
    %17 = vector.load %arg3[%c0_8, %c0_9] : memref<1x128xf32, #tpu.memory_space<vmem>>, vector<1x128xf32>
    %18 = vector.shape_cast %17 : vector<1x128xf32> to vector<1x1x128xf32>
    %19 = vector.shape_cast %18 : vector<1x1x128xf32> to vector<1x1x128xf32>
    %20 = vector.broadcast %19 : vector<1x1x128xf32> to vector<2x8x128xf32>
    %c-4_i32 = arith.constant -4 : i32
    %21 = vector.broadcast %c-4_i32 : i32 to vector<8x8xi32>
    %22 = arith.cmpi eq, %15, %21 : vector<8x8xi32>
    %cst_10 = arith.constant 0.000000e+00 : f32
    %23 = vector.shape_cast %22 : vector<8x8xi1> to vector<1x8x8xi1>
    %24 = vector.broadcast %23 : vector<1x8x8xi1> to vector<2x8x8xi1>
    %25 = vector.broadcast %cst_10 : f32 to vector<2x8x8xf32>
    %26 = arith.select %24, %12, %25 : vector<2x8x8xi1>, vector<2x8x8xf32>
    %cst_11 = arith.constant dense<0.000000e+00> : vector<2x8xf32>
    %27 = vector.multi_reduction <add>, %26, %cst_11 [2] : vector<2x8x8xf32> to vector<2x8xf32>
    %28 = vector.shape_cast %27 : vector<2x8xf32> to vector<2x8x1xf32>
    %29 = vector.extract_strided_slice %16 {offsets = [0, 0], sizes = [1, 128], strides = [1, 1]} : vector<9x128xf32> to vector<1x128xf32>
    %30 = vector.shape_cast %29 : vector<1x128xf32> to vector<1x1x128xf32>
    %31 = vector.broadcast %28 : vector<2x8x1xf32> to vector<2x8x128xf32>
    %32 = vector.broadcast %30 : vector<1x1x128xf32> to vector<2x8x128xf32>
    %33 = arith.mulf %31, %32 : vector<2x8x128xf32>
    %34 = arith.addf %20, %33 : vector<2x8x128xf32>
    %c-3_i32 = arith.constant -3 : i32
    %35 = vector.broadcast %c-3_i32 : i32 to vector<8x8xi32>
    %36 = arith.cmpi eq, %15, %35 : vector<8x8xi32>
    %cst_12 = arith.constant 0.000000e+00 : f32
    %37 = vector.shape_cast %36 : vector<8x8xi1> to vector<1x8x8xi1>
    %38 = vector.broadcast %37 : vector<1x8x8xi1> to vector<2x8x8xi1>
    %39 = vector.broadcast %cst_12 : f32 to vector<2x8x8xf32>
    %40 = arith.select %38, %12, %39 : vector<2x8x8xi1>, vector<2x8x8xf32>
    %cst_13 = arith.constant dense<0.000000e+00> : vector<2x8xf32>
    %41 = vector.multi_reduction <add>, %40, %cst_13 [2] : vector<2x8x8xf32> to vector<2x8xf32>
    %42 = vector.shape_cast %41 : vector<2x8xf32> to vector<2x8x1xf32>
    %43 = vector.extract_strided_slice %16 {offsets = [1, 0], sizes = [1, 128], strides = [1, 1]} : vector<9x128xf32> to vector<1x128xf32>
    %44 = vector.shape_cast %43 : vector<1x128xf32> to vector<1x1x128xf32>
    %45 = vector.broadcast %42 : vector<2x8x1xf32> to vector<2x8x128xf32>
    %46 = vector.broadcast %44 : vector<1x1x128xf32> to vector<2x8x128xf32>
    %47 = arith.mulf %45, %46 : vector<2x8x128xf32>
    %48 = arith.addf %34, %47 : vector<2x8x128xf32>
    %c-2_i32 = arith.constant -2 : i32
    %49 = vector.broadcast %c-2_i32 : i32 to vector<8x8xi32>
    %50 = arith.cmpi eq, %15, %49 : vector<8x8xi32>
    %cst_14 = arith.constant 0.000000e+00 : f32
    %51 = vector.shape_cast %50 : vector<8x8xi1> to vector<1x8x8xi1>
    %52 = vector.broadcast %51 : vector<1x8x8xi1> to vector<2x8x8xi1>
    %53 = vector.broadcast %cst_14 : f32 to vector<2x8x8xf32>
    %54 = arith.select %52, %12, %53 : vector<2x8x8xi1>, vector<2x8x8xf32>
    %cst_15 = arith.constant dense<0.000000e+00> : vector<2x8xf32>
    %55 = vector.multi_reduction <add>, %54, %cst_15 [2] : vector<2x8x8xf32> to vector<2x8xf32>
    %56 = vector.shape_cast %55 : vector<2x8xf32> to vector<2x8x1xf32>
    %57 = vector.extract_strided_slice %16 {offsets = [2, 0], sizes = [1, 128], strides = [1, 1]} : vector<9x128xf32> to vector<1x128xf32>
    %58 = vector.shape_cast %57 : vector<1x128xf32> to vector<1x1x128xf32>
    %59 = vector.broadcast %56 : vector<2x8x1xf32> to vector<2x8x128xf32>
    %60 = vector.broadcast %58 : vector<1x1x128xf32> to vector<2x8x128xf32>
    %61 = arith.mulf %59, %60 : vector<2x8x128xf32>
    %62 = arith.addf %48, %61 : vector<2x8x128xf32>
    %c-1_i32 = arith.constant -1 : i32
    %63 = vector.broadcast %c-1_i32 : i32 to vector<8x8xi32>
    %64 = arith.cmpi eq, %15, %63 : vector<8x8xi32>
    %cst_16 = arith.constant 0.000000e+00 : f32
    %65 = vector.shape_cast %64 : vector<8x8xi1> to vector<1x8x8xi1>
    %66 = vector.broadcast %65 : vector<1x8x8xi1> to vector<2x8x8xi1>
    %67 = vector.broadcast %cst_16 : f32 to vector<2x8x8xf32>
    %68 = arith.select %66, %12, %67 : vector<2x8x8xi1>, vector<2x8x8xf32>
    %cst_17 = arith.constant dense<0.000000e+00> : vector<2x8xf32>
    %69 = vector.multi_reduction <add>, %68, %cst_17 [2] : vector<2x8x8xf32> to vector<2x8xf32>
    %70 = vector.shape_cast %69 : vector<2x8xf32> to vector<2x8x1xf32>
    %71 = vector.extract_strided_slice %16 {offsets = [3, 0], sizes = [1, 128], strides = [1, 1]} : vector<9x128xf32> to vector<1x128xf32>
    %72 = vector.shape_cast %71 : vector<1x128xf32> to vector<1x1x128xf32>
    %73 = vector.broadcast %70 : vector<2x8x1xf32> to vector<2x8x128xf32>
    %74 = vector.broadcast %72 : vector<1x1x128xf32> to vector<2x8x128xf32>
    %75 = arith.mulf %73, %74 : vector<2x8x128xf32>
    %76 = arith.addf %62, %75 : vector<2x8x128xf32>
    %c0_i32 = arith.constant 0 : i32
    %77 = vector.broadcast %c0_i32 : i32 to vector<8x8xi32>
    %78 = arith.cmpi eq, %15, %77 : vector<8x8xi32>
    %cst_18 = arith.constant 0.000000e+00 : f32
    %79 = vector.shape_cast %78 : vector<8x8xi1> to vector<1x8x8xi1>
    %80 = vector.broadcast %79 : vector<1x8x8xi1> to vector<2x8x8xi1>
    %81 = vector.broadcast %cst_18 : f32 to vector<2x8x8xf32>
    %82 = arith.select %80, %12, %81 : vector<2x8x8xi1>, vector<2x8x8xf32>
    %cst_19 = arith.constant dense<0.000000e+00> : vector<2x8xf32>
    %83 = vector.multi_reduction <add>, %82, %cst_19 [2] : vector<2x8x8xf32> to vector<2x8xf32>
    %84 = vector.shape_cast %83 : vector<2x8xf32> to vector<2x8x1xf32>
    %85 = vector.extract_strided_slice %16 {offsets = [4, 0], sizes = [1, 128], strides = [1, 1]} : vector<9x128xf32> to vector<1x128xf32>
    %86 = vector.shape_cast %85 : vector<1x128xf32> to vector<1x1x128xf32>
    %87 = vector.broadcast %84 : vector<2x8x1xf32> to vector<2x8x128xf32>
    %88 = vector.broadcast %86 : vector<1x1x128xf32> to vector<2x8x128xf32>
    %89 = arith.mulf %87, %88 : vector<2x8x128xf32>
    %90 = arith.addf %76, %89 : vector<2x8x128xf32>
    %c1_i32 = arith.constant 1 : i32
    %91 = vector.broadcast %c1_i32 : i32 to vector<8x8xi32>
    %92 = arith.cmpi eq, %15, %91 : vector<8x8xi32>
    %cst_20 = arith.constant 0.000000e+00 : f32
    %93 = vector.shape_cast %92 : vector<8x8xi1> to vector<1x8x8xi1>
    %94 = vector.broadcast %93 : vector<1x8x8xi1> to vector<2x8x8xi1>
    %95 = vector.broadcast %cst_20 : f32 to vector<2x8x8xf32>
    %96 = arith.select %94, %12, %95 : vector<2x8x8xi1>, vector<2x8x8xf32>
    %cst_21 = arith.constant dense<0.000000e+00> : vector<2x8xf32>
    %97 = vector.multi_reduction <add>, %96, %cst_21 [2] : vector<2x8x8xf32> to vector<2x8xf32>
    %98 = vector.shape_cast %97 : vector<2x8xf32> to vector<2x8x1xf32>
    %99 = vector.extract_strided_slice %16 {offsets = [5, 0], sizes = [1, 128], strides = [1, 1]} : vector<9x128xf32> to vector<1x128xf32>
    %100 = vector.shape_cast %99 : vector<1x128xf32> to vector<1x1x128xf32>
    %101 = vector.broadcast %98 : vector<2x8x1xf32> to vector<2x8x128xf32>
    %102 = vector.broadcast %100 : vector<1x1x128xf32> to vector<2x8x128xf32>
    %103 = arith.mulf %101, %102 : vector<2x8x128xf32>
    %104 = arith.addf %90, %103 : vector<2x8x128xf32>
    %c2_i32 = arith.constant 2 : i32
    %105 = vector.broadcast %c2_i32 : i32 to vector<8x8xi32>
    %106 = arith.cmpi eq, %15, %105 : vector<8x8xi32>
    %cst_22 = arith.constant 0.000000e+00 : f32
    %107 = vector.shape_cast %106 : vector<8x8xi1> to vector<1x8x8xi1>
    %108 = vector.broadcast %107 : vector<1x8x8xi1> to vector<2x8x8xi1>
    %109 = vector.broadcast %cst_22 : f32 to vector<2x8x8xf32>
    %110 = arith.select %108, %12, %109 : vector<2x8x8xi1>, vector<2x8x8xf32>
    %cst_23 = arith.constant dense<0.000000e+00> : vector<2x8xf32>
    %111 = vector.multi_reduction <add>, %110, %cst_23 [2] : vector<2x8x8xf32> to vector<2x8xf32>
    %112 = vector.shape_cast %111 : vector<2x8xf32> to vector<2x8x1xf32>
    %113 = vector.extract_strided_slice %16 {offsets = [6, 0], sizes = [1, 128], strides = [1, 1]} : vector<9x128xf32> to vector<1x128xf32>
    %114 = vector.shape_cast %113 : vector<1x128xf32> to vector<1x1x128xf32>
    %115 = vector.broadcast %112 : vector<2x8x1xf32> to vector<2x8x128xf32>
    %116 = vector.broadcast %114 : vector<1x1x128xf32> to vector<2x8x128xf32>
    %117 = arith.mulf %115, %116 : vector<2x8x128xf32>
    %118 = arith.addf %104, %117 : vector<2x8x128xf32>
    %c3_i32 = arith.constant 3 : i32
    %119 = vector.broadcast %c3_i32 : i32 to vector<8x8xi32>
    %120 = arith.cmpi eq, %15, %119 : vector<8x8xi32>
    %cst_24 = arith.constant 0.000000e+00 : f32
    %121 = vector.shape_cast %120 : vector<8x8xi1> to vector<1x8x8xi1>
    %122 = vector.broadcast %121 : vector<1x8x8xi1> to vector<2x8x8xi1>
    %123 = vector.broadcast %cst_24 : f32 to vector<2x8x8xf32>
    %124 = arith.select %122, %12, %123 : vector<2x8x8xi1>, vector<2x8x8xf32>
    %cst_25 = arith.constant dense<0.000000e+00> : vector<2x8xf32>
    %125 = vector.multi_reduction <add>, %124, %cst_25 [2] : vector<2x8x8xf32> to vector<2x8xf32>
    %126 = vector.shape_cast %125 : vector<2x8xf32> to vector<2x8x1xf32>
    %127 = vector.extract_strided_slice %16 {offsets = [7, 0], sizes = [1, 128], strides = [1, 1]} : vector<9x128xf32> to vector<1x128xf32>
    %128 = vector.shape_cast %127 : vector<1x128xf32> to vector<1x1x128xf32>
    %129 = vector.broadcast %126 : vector<2x8x1xf32> to vector<2x8x128xf32>
    %130 = vector.broadcast %128 : vector<1x1x128xf32> to vector<2x8x128xf32>
    %131 = arith.mulf %129, %130 : vector<2x8x128xf32>
    %132 = arith.addf %118, %131 : vector<2x8x128xf32>
    %c4_i32 = arith.constant 4 : i32
    %133 = vector.broadcast %c4_i32 : i32 to vector<8x8xi32>
    %134 = arith.cmpi eq, %15, %133 : vector<8x8xi32>
    %cst_26 = arith.constant 0.000000e+00 : f32
    %135 = vector.shape_cast %134 : vector<8x8xi1> to vector<1x8x8xi1>
    %136 = vector.broadcast %135 : vector<1x8x8xi1> to vector<2x8x8xi1>
    %137 = vector.broadcast %cst_26 : f32 to vector<2x8x8xf32>
    %138 = arith.select %136, %12, %137 : vector<2x8x8xi1>, vector<2x8x8xf32>
    %cst_27 = arith.constant dense<0.000000e+00> : vector<2x8xf32>
    %139 = vector.multi_reduction <add>, %138, %cst_27 [2] : vector<2x8x8xf32> to vector<2x8xf32>
    %140 = vector.shape_cast %139 : vector<2x8xf32> to vector<2x8x1xf32>
    %141 = vector.extract_strided_slice %16 {offsets = [8, 0], sizes = [1, 128], strides = [1, 1]} : vector<9x128xf32> to vector<1x128xf32>
    %142 = vector.shape_cast %141 : vector<1x128xf32> to vector<1x1x128xf32>
    %143 = vector.broadcast %140 : vector<2x8x1xf32> to vector<2x8x128xf32>
    %144 = vector.broadcast %142 : vector<1x1x128xf32> to vector<2x8x128xf32>
    %145 = arith.mulf %143, %144 : vector<2x8x128xf32>
    %146 = arith.addf %132, %145 : vector<2x8x128xf32>
    %cst_28 = arith.constant 0.000000e+00 : f32
    %147 = vector.broadcast %cst_28 : f32 to vector<2x8x128xf32>
    %148 = arith.maximumf %146, %147 : vector<2x8x128xf32>
    %c0_29 = arith.constant 0 : index
    %c0_30 = arith.constant 0 : index
    %c0_31 = arith.constant 0 : index
    %149 = vector.load %arg4[%c0_29, %c0_30, %c0_31] : memref<2x8x128xf32, #tpu.memory_space<vmem>>, vector<2x8x128xf32>
    tpu.vector_store %arg4[%c0_29, %c0_30, %c0_31], %148 {strides = array<i32>} : memref<2x8x128xf32, #tpu.memory_space<vmem>>, vector<2x8x128xf32>,
    return
  }
}

</mosaic_0001>

<llo_original>
// kernel: tpu_custom_call.1
$region0: #{tpu_custom_call.1}
  #allocation0 [shape = 'u32[]', space=smem, size = 0x4, offset = 0x4, fixed_abs, tag = 'smem constant byte address 0x4 - core index']
  #allocation1 [shape = 'u32[144,128]{1,0:T(1,128)}', space=vmem, size = 0x12000, scoped, tag = 'internal scratch']
  %s0 = inlined_call_operand.hbm [shape: f32[16,16], index: 0, kind: input, shape index: {}]
  %s1 = inlined_call_operand.hbm [shape: f32[16,128], index: 1, kind: input, shape index: {}]
  %s2 = inlined_call_operand.hbm [shape: f32[9,128], index: 2, kind: input, shape index: {}]
  %s3 = inlined_call_operand.vmem [shape: f32[1,128], index: 3, kind: input, shape index: {}]
  %s4 = inlined_call_operand.hbm [shape: f32[2,8,128], index: 4, kind: output, shape index: {}]
  %s5 = sld [smem:[#allocation0]]
  $region38: #{tpu_custom_call.1} parent=0
    _
  %s7 = ssub.s32 1, %s5
  %s8 = scalar_select 0, %s7, %s5
  $region1: #{tpu_custom_call.1} parent=0
    #allocation2 [shape = 'u8[8192]{0}', space=vmem, size = 0x2000, scoped, tag = 'input window, operand 0, single buffered']
    #allocation3 [shape = 's32[1]{0}', space=sflag, size = 0x4, scoped, tag = 'scoped memory for tpu_custom_call.1']
    #allocation4 [shape = 's32[1]{0}', space=sflag, size = 0x4, scoped, tag = 'scoped memory for tpu_custom_call.1']
    #allocation5 [shape = 'u8[8192]{0}', space=vmem, size = 0x2000, scoped, tag = 'input window, operand 1, single buffered']
    #allocation6 [shape = 's32[1]{0}', space=sflag, size = 0x4, scoped, tag = 'scoped memory for tpu_custom_call.1']
    #allocation7 [shape = 'u8[8192]{0}', space=vmem, size = 0x2000, scoped, tag = 'input window, operand 2, single buffered']
    #allocation8 [shape = 'u8[8192]{0}', space=vmem, size = 0x2000, scoped, tag = 'output window, operand 0, single buffered']
    %9 = vsyncpa [#allocation3], 0
    %10 = vsyncpa [#allocation6], 0
    %11 = vsyncpa [#allocation4], 0
    // Predicated region
    $region2: #{tpu_custom_call.1} parent=1 // pred_check
      _
    $region3: #{tpu_custom_call.1} parent=1 // pred_check_branch
      %13 = sbr.rel (0) target = $region5
    $region4: #{tpu_custom_call.1} parent=1 // pred_region
      %s15 = ssub.s32 256, 256
      %16 = vsyncadd [#allocation3], %s15
      %s17 = sshll.u32 [#allocation2], 4
      %s18 = int_to_ptr.vmem [resolvable:$true] %s17
      %23 = dma.hbm_to_vmem [thread:$0]  %s0, 256, %s18, [#allocation3], 128, 128, 8
    $region5: #{tpu_custom_call.1} parent=1 // pred_fallthru
      _
    // Predicated region
    $region6: #{tpu_custom_call.1} parent=1 // pred_check
      _
    $region7: #{tpu_custom_call.1} parent=1 // pred_check_branch
      %25 = sbr.rel (0) target = $region9
    $region8: #{tpu_custom_call.1} parent=1 // pred_region
      %s27 = ssub.s32 256, 256
      %28 = vsyncadd [#allocation6], %s27
      %s29 = sshll.u32 [#allocation5], 4
      %s30 = int_to_ptr.vmem [resolvable:$true] %s29
      %35 = dma.hbm_to_vmem [thread:$0]  %s1, 256, %s30, [#allocation6], 128, 128, 8
    $region9: #{tpu_custom_call.1} parent=1 // pred_fallthru
      _
    // Predicated region
    $region10: #{tpu_custom_call.1} parent=1 // pred_check
      _
    $region11: #{tpu_custom_call.1} parent=1 // pred_check_branch
      %37 = sbr.rel (0) target = $region13
    $region12: #{tpu_custom_call.1} parent=1 // pred_region
      %s39 = ssub.s32 256, 256
      %40 = vsyncadd [#allocation6], %s39
      %s41 = sshll.u32 [#allocation7], 4
      %s42 = int_to_ptr.vmem [resolvable:$true] %s41
      %47 = dma.hbm_to_vmem [thread:$0]  %s2, 256, %s42, [#allocation6], 128, 128, 8
    $region13: #{tpu_custom_call.1} parent=1 // pred_fallthru
      _
    // Predicated region
    $region14: #{tpu_custom_call.1} parent=1 // pred_check
      _
    $region15: #{tpu_custom_call.1} parent=1 // pred_check_branch
      %49 = sbr.rel (0) target = $region17
    $region16: #{tpu_custom_call.1} parent=1 // pred_region
      _
    $region17: #{tpu_custom_call.1} parent=1 // pred_fallthru
      _
    // Predicated region
    $region18: #{tpu_custom_call.1} parent=1 // pred_check
      _
    $region19: #{tpu_custom_call.1} parent=1 // pred_check_branch
      %51 = sbr.rel (0) target = $region21
    $region20: #{tpu_custom_call.1} parent=1 // pred_region
      %52 = dma.done [#allocation3], 256
    $region21: #{tpu_custom_call.1} parent=1 // pred_fallthru
      _
    // Predicated region
    $region22: #{tpu_custom_call.1} parent=1 // pred_check
      _
    $region23: #{tpu_custom_call.1} parent=1 // pred_check_branch
      %54 = sbr.rel (0) target = $region25
    $region24: #{tpu_custom_call.1} parent=1 // pred_region
      %55 = dma.done [#allocation6], 256
    $region25: #{tpu_custom_call.1} parent=1 // pred_fallthru
      _
    // Predicated region
    $region26: #{tpu_custom_call.1} parent=1 // pred_check
      _
    $region27: #{tpu_custom_call.1} parent=1 // pred_check_branch
      %57 = sbr.rel (0) target = $region29
    $region28: #{tpu_custom_call.1} parent=1 // pred_region
      %58 = dma.done [#allocation6], 256
    $region29: #{tpu_custom_call.1} parent=1 // pred_fallthru
      _
    %v59 = vld [vmem:[#allocation2] sm:$0xff]
    %v60 = vld [vmem:[#allocation2 + $0x8] sm:$0xff]
    %v61 = vld [vmem:[#allocation5] sm:$0xff]
    %v62 = vld [vmem:[#allocation5 + $0x8] sm:$0xff]
    %vm63 = vcmask 130048
    %v65 = vsel %vm63, %v59, 0
    %v68 = vsel %vm63, %v60, 0
    %70 = vmatprep.subr.mxu0 0.0
    %71 = vmatpush1.msra.mxu0 %v61
    %72 = vmatprep.subr.mxu0 0.0
    %73 = vmatpush1.msra.mxu0 %v62
    %74 = vmatprep.subr.mxu0 0.0
    %75 = vmatpush1.msra.mxu0 0.0
    %76 = vmatprep.subr.mxu0 0.0
    %77 = vmatpush1.msra.mxu0 0.0
    %78 = vmatprep.subr.mxu0 0.0
    %79 = vmatpush1.msra.mxu0 0.0
    %80 = vmatprep.subr.mxu0 0.0
    %81 = vmatpush1.msra.mxu0 0.0
    %82 = vmatprep.subr.mxu0 0.0
    %83 = vmatpush1.msra.mxu0 0.0
    %84 = vmatprep.subr.mxu0 0.0
    %85 = vmatpush1.msra.mxu0 0.0
    %86 = vmatprep.subr.mxu0 0.0
    %87 = vmatpush1.msra.mxu0 0.0
    %88 = vmatprep.subr.mxu0 0.0
    %89 = vmatpush1.msra.mxu0 0.0
    %90 = vmatprep.subr.mxu0 0.0
    %91 = vmatpush1.msra.mxu0 0.0
    %92 = vmatprep.subr.mxu0 0.0
    %93 = vmatpush1.msra.mxu0 0.0
    %94 = vmatprep.subr.mxu0 0.0
    %95 = vmatpush1.msra.mxu0 0.0
    %96 = vmatprep.subr.mxu0 0.0
    %97 = vmatpush1.msra.mxu0 0.0
    %98 = vmatprep.subr.mxu0 0.0
    %99 = vmatpush1.msra.mxu0 0.0
    %100 = vmatprep.subr.mxu0 0.0
    %101 = vmatpush1.msra.mxu0 0.0
    %102 = vmatprep.subr.mxu0 0.0
    %103 = vmatpush1.msra.mxu0 0.0
    %104 = vmatprep.subr.mxu0 0.0
    %105 = vmatpush1.msra.mxu0 0.0
    %106 = vmatprep.subr.mxu0 0.0
    %107 = vmatpush1.msra.mxu0 0.0
    %108 = vmatprep.subr.mxu0 0.0
    %109 = vmatpush1.msra.mxu0 0.0
    %110 = vmatprep.subr.mxu0 0.0
    %111 = vmatpush1.msra.mxu0 0.0
    %112 = vmatprep.subr.mxu0 0.0
    %113 = vmatpush1.msra.mxu0 0.0
    %114 = vmatprep.subr.mxu0 0.0
    %115 = vmatpush1.msra.mxu0 0.0
    %116 = vmatprep.subr.mxu0 0.0
    %117 = vmatpush1.msra.mxu0 0.0
    %118 = vmatprep.subr.mxu0 0.0
    %119 = vmatpush1.msra.mxu0 0.0
    %120 = vmatprep.subr.mxu0 0.0
    %121 = vmatpush1.msra.mxu0 0.0
    %122 = vmatprep.subr.mxu0 0.0
    %123 = vmatpush1.msra.mxu0 0.0
    %124 = vmatprep.subr.mxu0 0.0
    %125 = vmatpush1.msra.mxu0 0.0
    %126 = vmatprep.subr.mxu0 0.0
    %127 = vmatpush1.msra.mxu0 0.0
    %128 = vmatprep.subr.mxu0 0.0
    %129 = vmatpush1.msra.mxu0 0.0
    %130 = vmatprep.subr.mxu0 0.0
    %131 = vmatpush1.msra.mxu0 0.0
    %132 = vmatprep.subr.mxu0 0.0
    %133 = vmatpush1.msra.mxu0 0.0
    %134 = vmatprep.mubr.f32.mxu0 0.0
    %135 = vmatmul.mubr.f32.gmra.mrb[0].mxu0 %v65
    %v136 = vpop.f32.mrb[0].mxu0
    %v137 = vadd.f32 0.0, %v136
    %v138 = vpop.f32.mrb[0].mxu0
    %139 = vmatprep.mubr.f32.mxu0 0.0
    %140 = vmatmul.mubr.f32.gmra.mrb[0].mxu0 %v68
    %v141 = vpop.f32.mrb[0].mxu0
    %v142 = vadd.f32 0.0, %v141
    %v143 = vpop.f32.mrb[0].mxu0
    %144 = vdwg.mxu0
    %v145 = vmul.f32 %v137, %v137
    %v146 = vmul.f32 %v142, %v142
    %147 = vadd.xlane.f32.xlu0 %v145
    %v148 = vpop.xlane.xlu0 %147
    %149 = vadd.xlane.f32.xlu0 %v146
    %v150 = vpop.xlane.xlu0 %149
    %v151 = vmax.f32 %v148, 1e-24
    %v152 = vmax.f32 %v150, 1e-24
    %v153 = vrsqrt.pop %v151
    %v154 = vrsqrt.pop %v152
    %v155 = vmul.f32 %v137, %v153
    %v156 = vmul.f32 %v142, %v154
    %157 = vmatprep.subr.mxu0 0.0
    %158 = vmatpush1.xpose.msra.mxu0 %v155
    %159 = vmatprep.subr.mxu0 0.0
    %160 = vmatpush1.xpose.msra.mxu0 0.0
    %161 = vmatprep.subr.mxu0 0.0
    %162 = vmatpush1.xpose.msra.mxu0 0.0
    %163 = vmatprep.subr.mxu0 0.0
    %164 = vmatpush1.xpose.msra.mxu0 0.0
    %165 = vmatprep.subr.mxu0 0.0
    %166 = vmatpush1.xpose.msra.mxu0 0.0
    %167 = vmatprep.subr.mxu0 0.0
    %168 = vmatpush1.xpose.msra.mxu0 0.0
    %169 = vmatprep.subr.mxu0 0.0
    %170 = vmatpush1.xpose.msra.mxu0 0.0
    %171 = vmatprep.subr.mxu0 0.0
    %172 = vmatpush1.xpose.msra.mxu0 0.0
    %173 = vmatprep.subr.mxu0 0.0
    %174 = vmatpush1.xpose.msra.mxu0 0.0
    %175 = vmatprep.subr.mxu0 0.0
    %176 = vmatpush1.xpose.msra.mxu0 0.0
    %177 = vmatprep.subr.mxu0 0.0
    %178 = vmatpush1.xpose.msra.mxu0 0.0
    %179 = vmatprep.subr.mxu0 0.0
    %180 = vmatpush1.xpose.msra.mxu0 0.0
    %181 = vmatprep.subr.mxu0 0.0
    %182 = vmatpush1.xpose.msra.mxu0 0.0
    %183 = vmatprep.subr.mxu0 0.0
    %184 = vmatpush1.xpose.msra.mxu0 0.0
    %185 = vmatprep.subr.mxu0 0.0
    %186 = vmatpush1.xpose.msra.mxu0 0.0
    %187 = vmatprep.subr.mxu0 0.0
    %188 = vmatpush1.xpose.msra.mxu0 0.0
    %189 = vmatprep.subr.mxu0 0.0
    %190 = vmatpush1.xpose.msra.mxu0 0.0
    %191 = vmatprep.subr.mxu0 0.0
    %192 = vmatpush1.xpose.msra.mxu0 0.0
    %193 = vmatprep.subr.mxu0 0.0
    %194 = vmatpush1.xpose.msra.mxu0 0.0
    %195 = vmatprep.subr.mxu0 0.0
    %196 = vmatpush1.xpose.msra.mxu0 0.0
    %197 = vmatprep.subr.mxu0 0.0
    %198 = vmatpush1.xpose.msra.mxu0 0.0
    %199 = vmatprep.subr.mxu0 0.0
    %200 = vmatpush1.xpose.msra.mxu0 0.0
    %201 = vmatprep.subr.mxu0 0.0
    %202 = vmatpush1.xpose.msra.mxu0 0.0
    %203 = vmatprep.subr.mxu0 0.0
    %204 = vmatpush1.xpose.msra.mxu0 0.0
    %205 = vmatprep.subr.mxu0 0.0
    %206 = vmatpush1.xpose.msra.mxu0 0.0
    %207 = vmatprep.subr.mxu0 0.0
    %208 = vmatpush1.xpose.msra.mxu0 0.0
    %209 = vmatprep.subr.mxu0 0.0
    %210 = vmatpush1.xpose.msra.mxu0 0.0
    %211 = vmatprep.subr.mxu0 0.0
    %212 = vmatpush1.xpose.msra.mxu0 0.0
    %213 = vmatprep.subr.mxu0 0.0
    %214 = vmatpush1.xpose.msra.mxu0 0.0
    %215 = vmatprep.subr.mxu0 0.0
    %216 = vmatpush1.xpose.msra.mxu0 0.0
    %217 = vmatprep.subr.mxu0 0.0
    %218 = vmatpush1.xpose.msra.mxu0 0.0
    %219 = vmatprep.subr.mxu0 0.0
    %220 = vmatpush1.xpose.msra.mxu0 0.0
    %221 = vmatprep.mubr.f32.mxu0 0.0
    %222 = vmatmul.mubr.f32.gmra.mrb[0].mxu0 %v155
    %v223 = vpop.f32.mrb[0].mxu0
    %v224 = vadd.f32 0.0, %v223
    %v225 = vpop.f32.mrb[0].mxu0
    %226 = vdwg.mxu0
    %227 = vmatprep.subr.mxu0 0.0
    %228 = vmatpush1.xpose.msra.mxu0 %v156
    %229 = vmatprep.subr.mxu0 0.0
    %230 = vmatpush1.xpose.msra.mxu0 0.0
    %231 = vmatprep.subr.mxu0 0.0
    %232 = vmatpush1.xpose.msra.mxu0 0.0
    %233 = vmatprep.subr.mxu0 0.0
    %234 = vmatpush1.xpose.msra.mxu0 0.0
    %235 = vmatprep.subr.mxu0 0.0
    %236 = vmatpush1.xpose.msra.mxu0 0.0
    %237 = vmatprep.subr.mxu0 0.0
    %238 = vmatpush1.xpose.msra.mxu0 0.0
    %239 = vmatprep.subr.mxu0 0.0
    %240 = vmatpush1.xpose.msra.mxu0 0.0
    %241 = vmatprep.subr.mxu0 0.0
    %242 = vmatpush1.xpose.msra.mxu0 0.0
    %243 = vmatprep.subr.mxu0 0.0
    %244 = vmatpush1.xpose.msra.mxu0 0.0
    %245 = vmatprep.subr.mxu0 0.0
    %246 = vmatpush1.xpose.msra.mxu0 0.0
    %247 = vmatprep.subr.mxu0 0.0
    %248 = vmatpush1.xpose.msra.mxu0 0.0
    %249 = vmatprep.subr.mxu0 0.0
    %250 = vmatpush1.xpose.msra.mxu0 0.0
    %251 = vmatprep.subr.mxu0 0.0
    %252 = vmatpush1.xpose.msra.mxu0 0.0
    %253 = vmatprep.subr.mxu0 0.0
    %254 = vmatpush1.xpose.msra.mxu0 0.0
    %255 = vmatprep.subr.mxu0 0.0
    %256 = vmatpush1.xpose.msra.mxu0 0.0
    %257 = vmatprep.subr.mxu0 0.0
    %258 = vmatpush1.xpose.msra.mxu0 0.0
    %259 = vmatprep.subr.mxu0 0.0
    %260 = vmatpush1.xpose.msra.mxu0 0.0
    %261 = vmatprep.subr.mxu0 0.0
    %262 = vmatpush1.xpose.msra.mxu0 0.0
    %263 = vmatprep.subr.mxu0 0.0
    %264 = vmatpush1.xpose.msra.mxu0 0.0
    %265 = vmatprep.subr.mxu0 0.0
    %266 = vmatpush1.xpose.msra.mxu0 0.0
    %267 = vmatprep.subr.mxu0 0.0
    %268 = vmatpush1.xpose.msra.mxu0 0.0
    %269 = vmatprep.subr.mxu0 0.0
    %270 = vmatpush1.xpose.msra.mxu0 0.0
    %271 = vmatprep.subr.mxu0 0.0
    %272 = vmatpush1.xpose.msra.mxu0 0.0
    %273 = vmatprep.subr.mxu0 0.0
    %274 = vmatpush1.xpose.msra.mxu0 0.0
    %275 = vmatprep.subr.mxu0 0.0
    %276 = vmatpush1.xpose.msra.mxu0 0.0
    %277 = vmatprep.subr.mxu0 0.0
    %278 = vmatpush1.xpose.msra.mxu0 0.0
    %279 = vmatprep.subr.mxu0 0.0
    %280 = vmatpush1.xpose.msra.mxu0 0.0
    %281 = vmatprep.subr.mxu0 0.0
    %282 = vmatpush1.xpose.msra.mxu0 0.0
    %283 = vmatprep.subr.mxu0 0.0
    %284 = vmatpush1.xpose.msra.mxu0 0.0
    %285 = vmatprep.subr.mxu0 0.0
    %286 = vmatpush1.xpose.msra.mxu0 0.0
    %287 = vmatprep.subr.mxu0 0.0
    %288 = vmatpush1.xpose.msra.mxu0 0.0
    %289 = vmatprep.subr.mxu0 0.0
    %290 = vmatpush1.xpose.msra.mxu0 0.0
    %291 = vmatprep.mubr.f32.mxu0 0.0
    %292 = vmatmul.mubr.f32.gmra.mrb[0].mxu0 %v156
    %v293 = vpop.f32.mrb[0].mxu0
    %v294 = vadd.f32 0.0, %v293
    %v295 = vpop.f32.mrb[0].mxu0
    %296 = vdwg.mxu0
    %v297 = vlaneseq
    %v298 = vshrl.u32 %v297, 7
    %v299 = vlaneseq
    %v300 = vand.u32 %v299, 127
    %v301 = vsub.s32 %v300, %v298
    %v302 = vld [vmem:[#allocation7] sm:$0xff]
    %v303 = vld [vmem:[#allocation7 + $0x8] sm:$0x1]
    %v304 = vld [vmem:[%s3] sm:$0x1]
    %v306 = vlaneseq
    %v307 = vshrl.u32 %v306, 7
    %v308 = vsub.s32 0, %v307
    %v309 = vrot.slane %v304, %v308
    %vm311 = vcmp.eq.s32.totalorder %v301, 4294967292
    %v312 = vsel %vm311, 1, 0
    %vm313 = vcmp.eq.s32.totalorder %v312, 1
    %v314 = vsel %vm313, %v224, 0.0
    %v315 = vsel %vm313, %v294, 0.0
    %vm316 = vcmask 64512
    %v317 = vsel %vm316, %v314, 0.0
    %318 = vadd.xlane.f32.xlu0 %v317
    %v319 = vpop.xlane.xlu0 %318
    %v320 = vsel %vm316, %v315, 0.0
    %321 = vadd.xlane.f32.xlu0 %v320
    %v322 = vpop.xlane.xlu0 %321
    %v323 = vlaneseq
    %v324 = vshrl.u32 %v323, 7
    %v325 = vsub.s32 0, %v324
    %v326 = vrot.slane %v302, %v325
    %v327 = vmul.f32 %v319, %v326
    %v328 = vmul.f32 %v322, %v326
    %v329 = vadd.f32 %v309, %v327
    %v330 = vadd.f32 %v309, %v328
    %vm331 = vcmp.eq.s32.totalorder %v301, 4294967293
    %v332 = vsel %vm331, 1, 0
    %vm333 = vcmp.eq.s32.totalorder %v332, 1
    %v334 = vsel %vm333, %v224, 0.0
    %v335 = vsel %vm333, %v294, 0.0
    %v336 = vsel %vm316, %v334, 0.0
    %337 = vadd.xlane.f32.xlu0 %v336
    %v338 = vpop.xlane.xlu0 %337
    %v339 = vsel %vm316, %v335, 0.0
    %340 = vadd.xlane.f32.xlu0 %v339
    %v341 = vpop.xlane.xlu0 %340
    %v342 = vlaneseq
    %v343 = vshrl.u32 %v342, 7
    %v344 = vsub.s32 1, %v343
    %v345 = vrot.slane %v302, %v344
    %v346 = vmul.f32 %v338, %v345
    %v347 = vmul.f32 %v341, %v345
    %v348 = vadd.f32 %v329, %v346
    %v349 = vadd.f32 %v330, %v347
    %vm350 = vcmp.eq.s32.totalorder %v301, 4294967294
    %v351 = vsel %vm350, 1, 0
    %vm352 = vcmp.eq.s32.totalorder %v351, 1
    %v353 = vsel %vm352, %v224, 0.0
    %v354 = vsel %vm352, %v294, 0.0
    %v355 = vsel %vm316, %v353, 0.0
    %356 = vadd.xlane.f32.xlu0 %v355
    %v357 = vpop.xlane.xlu0 %356
    %v358 = vsel %vm316, %v354, 0.0
    %359 = vadd.xlane.f32.xlu0 %v358
    %v360 = vpop.xlane.xlu0 %359
    %v361 = vlaneseq
    %v362 = vshrl.u32 %v361, 7
    %v363 = vsub.s32 2, %v362
    %v364 = vrot.slane %v302, %v363
    %v365 = vmul.f32 %v357, %v364
    %v366 = vmul.f32 %v360, %v364
    %v367 = vadd.f32 %v348, %v365
    %v368 = vadd.f32 %v349, %v366
    %vm369 = vcmp.eq.s32.totalorder %v301, 4294967295
    %v370 = vsel %vm369, 1, 0
    %vm371 = vcmp.eq.s32.totalorder %v370, 1
    %v372 = vsel %vm371, %v224, 0.0
    %v373 = vsel %vm371, %v294, 0.0
    %v374 = vsel %vm316, %v372, 0.0
    %375 = vadd.xlane.f32.xlu0 %v374
    %v376 = vpop.xlane.xlu0 %375
    %v377 = vsel %vm316, %v373, 0.0
    %378 = vadd.xlane.f32.xlu0 %v377
    %v379 = vpop.xlane.xlu0 %378
    %v380 = vlaneseq
    %v381 = vshrl.u32 %v380, 7
    %v382 = vsub.s32 3, %v381
    %v383 = vrot.slane %v302, %v382
    %v384 = vmul.f32 %v376, %v383
    %v385 = vmul.f32 %v379, %v383
    %v386 = vadd.f32 %v367, %v384
    %v387 = vadd.f32 %v368, %v385
    %vm388 = vcmp.eq.s32.totalorder %v301, 0
    %v389 = vsel %vm388, 1, 0
    %vm390 = vcmp.eq.s32.totalorder %v389, 1
    %v391 = vsel %vm390, %v224, 0.0
    %v392 = vsel %vm390, %v294, 0.0
    %v393 = vsel %vm316, %v391, 0.0
    %394 = vadd.xlane.f32.xlu0 %v393
    %v395 = vpop.xlane.xlu0 %394
    %v396 = vsel %vm316, %v392, 0.0
    %397 = vadd.xlane.f32.xlu0 %v396
    %v398 = vpop.xlane.xlu0 %397
    %v399 = vlaneseq
    %v400 = vshrl.u32 %v399, 7
    %v401 = vsub.s32 4, %v400
    %v402 = vrot.slane %v302, %v401
    %v403 = vmul.f32 %v395, %v402
    %v404 = vmul.f32 %v398, %v402
    %v405 = vadd.f32 %v386, %v403
    %v406 = vadd.f32 %v387, %v404
    %vm407 = vcmp.eq.s32.totalorder %v301, 1
    %v408 = vsel %vm407, 1, 0
    %vm409 = vcmp.eq.s32.totalorder %v408, 1
    %v410 = vsel %vm409, %v224, 0.0
    %v411 = vsel %vm409, %v294, 0.0
    %v412 = vsel %vm316, %v410, 0.0
    %413 = vadd.xlane.f32.xlu0 %v412
    %v414 = vpop.xlane.xlu0 %413
    %v415 = vsel %vm316, %v411, 0.0
    %416 = vadd.xlane.f32.xlu0 %v415
    %v417 = vpop.xlane.xlu0 %416
    %v418 = vlaneseq
    %v419 = vshrl.u32 %v418, 7
    %v420 = vsub.s32 5, %v419
    %v421 = vrot.slane %v302, %v420
    %v422 = vmul.f32 %v414, %v421
    %v423 = vmul.f32 %v417, %v421
    %v424 = vadd.f32 %v405, %v422
    %v425 = vadd.f32 %v406, %v423
    %vm426 = vcmp.eq.s32.totalorder %v301, 2
    %v427 = vsel %vm426, 1, 0
    %vm428 = vcmp.eq.s32.totalorder %v427, 1
    %v429 = vsel %vm428, %v224, 0.0
    %v430 = vsel %vm428, %v294, 0.0
    %v431 = vsel %vm316, %v429, 0.0
    %432 = vadd.xlane.f32.xlu0 %v431
    %v433 = vpop.xlane.xlu0 %432
    %v434 = vsel %vm316, %v430, 0.0
    %435 = vadd.xlane.f32.xlu0 %v434
    %v436 = vpop.xlane.xlu0 %435
    %v437 = vlaneseq
    %v438 = vshrl.u32 %v437, 7
    %v439 = vsub.s32 6, %v438
    %v440 = vrot.slane %v302, %v439
    %v441 = vmul.f32 %v433, %v440
    %v442 = vmul.f32 %v436, %v440
    %v443 = vadd.f32 %v424, %v441
    %v444 = vadd.f32 %v425, %v442
    %vm445 = vcmp.eq.s32.totalorder %v301, 3
    %v446 = vsel %vm445, 1, 0
    %vm447 = vcmp.eq.s32.totalorder %v446, 1
    %v448 = vsel %vm447, %v224, 0.0
    %v449 = vsel %vm447, %v294, 0.0
    %v450 = vsel %vm316, %v448, 0.0
    %451 = vadd.xlane.f32.xlu0 %v450
    %v452 = vpop.xlane.xlu0 %451
    %v453 = vsel %vm316, %v449, 0.0
    %454 = vadd.xlane.f32.xlu0 %v453
    %v455 = vpop.xlane.xlu0 %454
    %v456 = vlaneseq
    %v457 = vshrl.u32 %v456, 7
    %v458 = vsub.s32 7, %v457
    %v459 = vrot.slane %v302, %v458
    %v460 = vmul.f32 %v452, %v459
    %v461 = vmul.f32 %v455, %v459
    %v462 = vadd.f32 %v443, %v460
    %v463 = vadd.f32 %v444, %v461
    %vm464 = vcmp.eq.s32.totalorder %v301, 4
    %v465 = vsel %vm464, 1, 0
    %vm466 = vcmp.eq.s32.totalorder %v465, 1
    %v467 = vsel %vm466, %v224, 0.0
    %v468 = vsel %vm466, %v294, 0.0
    %v469 = vsel %vm316, %v467, 0.0
    %470 = vadd.xlane.f32.xlu0 %v469
    %v471 = vpop.xlane.xlu0 %470
    %v472 = vsel %vm316, %v468, 0.0
    %473 = vadd.xlane.f32.xlu0 %v472
    %v474 = vpop.xlane.xlu0 %473
    %v475 = vlaneseq
    %v476 = vshrl.u32 %v475, 7
    %v477 = vsub.s32 0, %v476
    %v478 = vrot.slane %v303, %v477
    %v479 = vmul.f32 %v471, %v478
    %v480 = vmul.f32 %v474, %v478
    %v481 = vadd.f32 %v462, %v479
    %v482 = vadd.f32 %v463, %v480
    %v483 = vmax.f32 %v481, 0.0
    %v484 = vmax.f32 %v482, 0.0
    %485 = vst [vmem:[#allocation8] sm:$0xff] %v483
    %486 = vst [vmem:[#allocation8 + $0x8] sm:$0xff] %v484
    // Predicated region
    $region30: #{tpu_custom_call.1} parent=1 // pred_check
      _
    $region31: #{tpu_custom_call.1} parent=1 // pred_check_branch
      %488 = sbr.rel (0) target = $region33
    $region32: #{tpu_custom_call.1} parent=1 // pred_region
      %s490 = ssub.s32 256, 256
      %491 = vsyncadd [#allocation4], %s490
      %s492 = sshll.u32 [#allocation8], 4
      %s493 = int_to_ptr.vmem [resolvable:$true] %s492
      %498 = dma.vmem_to_hbm [thread:$0]  %s493, 256, %s4, [#allocation4], 128, 128, 8
    $region33: #{tpu_custom_call.1} parent=1 // pred_fallthru
      _
    // Predicated region
    $region34: #{tpu_custom_call.1} parent=1 // pred_check
      _
    $region35: #{tpu_custom_call.1} parent=1 // pred_check_branch
      %500 = sbr.rel (0) target = $region37
    $region36: #{tpu_custom_call.1} parent=1 // pred_region
      %501 = dma.done [#allocation4], 256
    $region37: #{tpu_custom_call.1} parent=1 // pred_fallthru
      _
    %502 = vsyncpa [#allocation3], 1
    %503 = vsyncpa [#allocation6], 1
    %504 = vsyncpa [#allocation4], 1

</llo_original>
